<compile_context>
chip_gen: v6e
topology: v6e:2x2x1
jax: 0.10.0
libtpu: 0.0.40
codegen_flags: <defaults>
</compile_context>

<pallas_src>
import functools
import math

import jax
import jax.numpy as jnp
from jax.experimental import pallas as pl
from jax.experimental.pallas import tpu as pltpu

HIDDEN = 20                       # hidden_neurons default of SEIRDNet
NUM_LAYERS = 4                    # num_layers default -> 5 Linear layers total
NUM_HIDDEN_MM = NUM_LAYERS - 1    # number of (H,H) hidden matmul layers (3)
OUT_DIM = 5

# Below this row count a single grid block is strictly cheaper than splitting:
# per-grid-step overhead (~0.35 us) is about one block's entire compute here.
_SINGLE_BLOCK_MAX = 2048
# Multi-block tile width for long time series (>=1024 reaches ~85%+ per-step
# efficiency; per-block footprint ~ 6*block_m*4 B + 5.5 KB of weights).
_LARGE_N_BLOCK_M = 1024


def seird_mlp_kernel(t_ref, w1_ref, b1_ref, wh_ref, bh_ref, w5_ref, b5_ref,
                     o_ref, *, compute_dtype):
    """One batch tile of the SEIRD MLP; batch on the lane axis, all in VMEM."""
    cd = compute_dtype
    x = t_ref[...].astype(cd)                                          # (1, tm)

    # Layer 1: Linear(1, H) is an outer product -> broadcast FMA on the VPU.
    h = jnp.tanh(w1_ref[...].astype(cd) * x + b1_ref[...].astype(cd))  # (H, tm)

    # Hidden layers: (H, H) @ (H, tm) on the MXU, f32 accumulation,
    # lane-dense activations.  Static Python loop -> fully unrolled.
    for l in range(NUM_HIDDEN_MM):
        y = jnp.dot(wh_ref[l].astype(cd), h,
                    preferred_element_type=jnp.float32) + bh_ref[l]
        h = jnp.tanh(y.astype(cd))

    # Output layer: (5, H) @ (H, tm), lane-dense (5, tm) store.
    y = jnp.dot(w5_ref[...].astype(cd), h,
                preferred_element_type=jnp.float32) + b5_ref[...]      # (5, tm)
    o_ref[...] = jax.nn.sigmoid(y).astype(o_ref.dtype)


def _resident_spec(shape):
    """Whole-array block, same block index every grid step (stays in VMEM)."""
    nd = len(shape)
    return pl.BlockSpec(shape, lambda i: (0,) * nd)


@functools.partial(jax.jit,
                   static_argnames=("block_m", "compute_dtype", "transpose_output"))
def seirdnet_forward(t, params, *, block_m=None, compute_dtype=jnp.float32,
                     transpose_output=True):
    """t: (N, 1) float32 -> (N, 5) float32 = sigmoid(MLP(t)).

    block_m=None picks a single block for N <= 2048 and 1024-wide tiles beyond
    that (raise to 4096-16384 for very long series; keep the block count even
    so both v7x TensorCores stay balanced).  compute_dtype=jnp.bfloat16 is worth
    it on v6e/v7x at large N (keep f32 on v5e).  Set transpose_output=False if
    the consumer accepts (5, N) and wants to skip the final transpose.
    """
    N = t.shape[0]
    if block_m is None:
        if N <= _SINGLE_BLOCK_MAX:
            block_m = 256 * pl.cdiv(N, 256)     # one grid block (latency-bound regime)
        else:
            block_m = _LARGE_N_BLOCK_M
    num_blocks = pl.cdiv(N, block_m)

    w1, b1, wh, bh, w5, b5 = params

    # Batch on lanes: (1, N).  No explicit zero-pad; Pallas masks the ragged
    # last block's writes (garbage columns are computed but never stored).
    x = t.reshape(1, N)

    in_specs = [pl.BlockSpec((1, block_m), lambda i: (0, i))]
    for p in (w1, b1, wh, bh, w5, b5):
        in_specs.append(_resident_spec(p.shape))

    # Advisory cost: ~2705 flops and 85 transcendentals per time step.
    flops_per_col = (2 * HIDDEN
                     + NUM_HIDDEN_MM * (2 * HIDDEN * HIDDEN + HIDDEN)
                     + 2 * HIDDEN * OUT_DIM + OUT_DIM)
    trans_per_col = NUM_LAYERS * HIDDEN + OUT_DIM
    param_bytes = 4 * (HIDDEN + HIDDEN
                       + NUM_HIDDEN_MM * (HIDDEN * HIDDEN + HIDDEN)
                       + OUT_DIM * HIDDEN + OUT_DIM)
    cost = pl.CostEstimate(flops=flops_per_col * N,
                           transcendentals=trans_per_col * N,
                           bytes_accessed=4 * (1 + OUT_DIM) * N + param_bytes)

    out = pl.pallas_call(
        functools.partial(seird_mlp_kernel, compute_dtype=compute_dtype),
        out_shape=jax.ShapeDtypeStruct((OUT_DIM, N), jnp.float32),
        grid_spec=pltpu.PrefetchScalarGridSpec(
            num_scalar_prefetch=0,
            grid=(num_blocks,),
            in_specs=in_specs,
            out_specs=pl.BlockSpec((OUT_DIM, block_m), lambda i: (0, i)),
        ),
        compiler_params=pltpu.CompilerParams(
            dimension_semantics=("parallel",)),
        cost_estimate=cost,
    )(x, w1, b1, wh, bh, w5, b5)

    # Kernel output is lane-dense (5, N); PyTorch-facing layout is (N, 5).
    return out.T if transpose_output else out


def init_params(key, hidden=HIDDEN, num_layers=NUM_LAYERS, out_dim=OUT_DIM):
    """Xavier-uniform weights with tanh gain (5/3), zero biases.

    PyTorch (out_features, in_features) weight layout; biases are (out, 1)
    column vectors.  Hidden layers are stacked into (L-1, H, H) / (L-1, H, 1)
    slabs so the kernel issues fewer parameter DMAs.  Deterministic synthetic
    init (mirrors SEIRDNet.init_xavier semantics, not PyTorch's RNG stream)."""
    gain = 5.0 / 3.0  # nn.init.calculate_gain('tanh')

    def xavier(k, fan_out, fan_in, shape):
        bound = gain * math.sqrt(6.0 / (fan_in + fan_out))
        return jax.random.uniform(k, shape, jnp.float32,
                                  minval=-bound, maxval=bound)

    k1, k2, k3 = jax.random.split(key, 3)
    w1 = xavier(k1, hidden, 1, (hidden, 1))
    b1 = jnp.zeros((hidden, 1), jnp.float32)
    wh = xavier(k2, hidden, hidden, (num_layers - 1, hidden, hidden))
    bh = jnp.zeros((num_layers - 1, hidden, 1), jnp.float32)
    w5 = xavier(k3, out_dim, hidden, (out_dim, hidden))
    b5 = jnp.zeros((out_dim, 1), jnp.float32)
    return (w1, b1, wh, bh, w5, b5)


def reference_forward(t, params):
    """Pure-JAX reference (row-major, PyTorch-style nn.Linear semantics)."""
    w1, b1, wh, bh, w5, b5 = params
    h = jnp.tanh(t @ w1.T + b1.T)                 # (N, H)
    for l in range(wh.shape[0]):
        h = jnp.tanh(h @ wh[l].T + bh[l].T)       # (N, H)
    return jax.nn.sigmoid(h @ w5.T + b5.T)        # (N, 5)


if __name__ == "__main__":
    key = jax.random.PRNGKey(0)
    params = init_params(key)

    # Time vector, analogous to t = arange(len(data)).view(-1, 1).
    # N=365 is in the latency-bound regime -> a single 512-wide grid block.
    N = 365
    t = jnp.arange(N, dtype=jnp.float32).reshape(N, 1)

    out = jax.block_until_ready(seirdnet_forward(t, params))

    ref = reference_forward(t, params)
    assert out.shape == (N, OUT_DIM)
    assert jnp.allclose(out, ref, atol=1e-5, rtol=1e-5), "mismatch vs reference"

    print("KERNEL_OK")
</pallas_src>

<mosaic_0001>
module attributes {stable_mosaic.version = 11 : i64} {
  func.func @seird_mlp_kernel(%arg0: i32, %arg1: memref<1x512xf32, #tpu.memory_space<vmem>>, %arg2: memref<20x1xf32, #tpu.memory_space<vmem>>, %arg3: memref<20x1xf32, #tpu.memory_space<vmem>>, %arg4: memref<3x20x20xf32, #tpu.memory_space<vmem>>, %arg5: memref<3x20x1xf32, #tpu.memory_space<vmem>>, %arg6: memref<5x20xf32, #tpu.memory_space<vmem>>, %arg7: memref<5x1xf32, #tpu.memory_space<vmem>>, %arg8: memref<5x512xf32, #tpu.memory_space<vmem>>) attributes {dimension_semantics = [#tpu.dimension_semantics<parallel>], iteration_bounds = array<i64: 1>, scalar_prefetch = 0 : i64, scratch_operands = 0 : i64, tpu.core_type = #tpu.core_type<tc>, window_params = [{transform_indices = @transform_0, window_bounds = array<i64: 1, 512>}, {pipeline_mode = #tpu.pipeline_mode<synchronous>, transform_indices = @transform_1, window_bounds = array<i64: 20, 1>}, {pipeline_mode = #tpu.pipeline_mode<synchronous>, transform_indices = @transform_2, window_bounds = array<i64: 20, 1>}, {pipeline_mode = #tpu.pipeline_mode<synchronous>, transform_indices = @transform_3, window_bounds = array<i64: 3, 20, 20>}, {pipeline_mode = #tpu.pipeline_mode<synchronous>, transform_indices = @transform_4, window_bounds = array<i64: 3, 20, 1>}, {pipeline_mode = #tpu.pipeline_mode<synchronous>, transform_indices = @transform_5, window_bounds = array<i64: 5, 20>}, {pipeline_mode = #tpu.pipeline_mode<synchronous>, transform_indices = @transform_6, window_bounds = array<i64: 5, 1>}, {transform_indices = @transform_7, window_bounds = array<i64: 5, 512>}]} {
    %c0 = arith.constant 0 : index
    %c0_0 = arith.constant 0 : index
    %0 = vector.load %arg1[%c0, %c0_0] : memref<1x512xf32, #tpu.memory_space<vmem>>, vector<1x512xf32>
    %c0_1 = arith.constant 0 : index
    %c0_2 = arith.constant 0 : index
    %1 = vector.load %arg2[%c0_1, %c0_2] : memref<20x1xf32, #tpu.memory_space<vmem>>, vector<20x1xf32>
    %2 = vector.broadcast %1 : vector<20x1xf32> to vector<20x512xf32>
    %3 = vector.broadcast %0 : vector<1x512xf32> to vector<20x512xf32>
    %4 = arith.mulf %2, %3 : vector<20x512xf32>
    %c0_3 = arith.constant 0 : index
    %c0_4 = arith.constant 0 : index
    %5 = vector.load %arg3[%c0_3, %c0_4] : memref<20x1xf32, #tpu.memory_space<vmem>>, vector<20x1xf32>
    %6 = vector.broadcast %5 : vector<20x1xf32> to vector<20x512xf32>
    %7 = arith.addf %4, %6 : vector<20x512xf32>
    %8 = math.tanh %7 : vector<20x512xf32>
    %c0_5 = arith.constant 0 : index
    %c0_6 = arith.constant 0 : index
    %c0_7 = arith.constant 0 : index
    %9 = vector.load %arg4[%c0_5, %c0_6, %c0_7] : memref<3x20x20xf32, #tpu.memory_space<vmem>>, vector<1x20x20xf32>
    %10 = vector.shape_cast %9 : vector<1x20x20xf32> to vector<20x20xf32>
    %cst = arith.constant dense<0.000000e+00> : vector<20x512xf32>
    %11 = tpu.matmul %10, %8, %cst {dimension_numbers = #tpu.dot_dimension_numbers<[1], [0], [0], [1], [0, 0, 1, 1], [], []>} : vector<20x20xf32>, vector<20x512xf32>, vector<20x512xf32> -> vector<20x512xf32>
    %c0_8 = arith.constant 0 : index
    %c0_9 = arith.constant 0 : index
    %c0_10 = arith.constant 0 : index
    %12 = vector.load %arg5[%c0_8, %c0_9, %c0_10] : memref<3x20x1xf32, #tpu.memory_space<vmem>>, vector<1x20x1xf32>
    %13 = vector.shape_cast %12 : vector<1x20x1xf32> to vector<20x1xf32>
    %14 = vector.broadcast %13 : vector<20x1xf32> to vector<20x512xf32>
    %15 = arith.addf %11, %14 : vector<20x512xf32>
    %16 = math.tanh %15 : vector<20x512xf32>
    %c1 = arith.constant 1 : index
    %c0_11 = arith.constant 0 : index
    %c0_12 = arith.constant 0 : index
    %17 = vector.load %arg4[%c1, %c0_11, %c0_12] : memref<3x20x20xf32, #tpu.memory_space<vmem>>, vector<1x20x20xf32>
    %18 = vector.shape_cast %17 : vector<1x20x20xf32> to vector<20x20xf32>
    %cst_13 = arith.constant dense<0.000000e+00> : vector<20x512xf32>
    %19 = tpu.matmul %18, %16, %cst_13 {dimension_numbers = #tpu.dot_dimension_numbers<[1], [0], [0], [1], [0, 0, 1, 1], [], []>} : vector<20x20xf32>, vector<20x512xf32>, vector<20x512xf32> -> vector<20x512xf32>
    %c1_14 = arith.constant 1 : index
    %c0_15 = arith.constant 0 : index
    %c0_16 = arith.constant 0 : index
    %20 = vector.load %arg5[%c1_14, %c0_15, %c0_16] : memref<3x20x1xf32, #tpu.memory_space<vmem>>, vector<1x20x1xf32>
    %21 = vector.shape_cast %20 : vector<1x20x1xf32> to vector<20x1xf32>
    %22 = vector.broadcast %21 : vector<20x1xf32> to vector<20x512xf32>
    %23 = arith.addf %19, %22 : vector<20x512xf32>
    %24 = math.tanh %23 : vector<20x512xf32>
    %c2 = arith.constant 2 : index
    %c0_17 = arith.constant 0 : index
    %c0_18 = arith.constant 0 : index
    %25 = vector.load %arg4[%c2, %c0_17, %c0_18] : memref<3x20x20xf32, #tpu.memory_space<vmem>>, vector<1x20x20xf32>
    %26 = vector.shape_cast %25 : vector<1x20x20xf32> to vector<20x20xf32>
    %cst_19 = arith.constant dense<0.000000e+00> : vector<20x512xf32>
    %27 = tpu.matmul %26, %24, %cst_19 {dimension_numbers = #tpu.dot_dimension_numbers<[1], [0], [0], [1], [0, 0, 1, 1], [], []>} : vector<20x20xf32>, vector<20x512xf32>, vector<20x512xf32> -> vector<20x512xf32>
    %c2_20 = arith.constant 2 : index
    %c0_21 = arith.constant 0 : index
    %c0_22 = arith.constant 0 : index
    %28 = vector.load %arg5[%c2_20, %c0_21, %c0_22] : memref<3x20x1xf32, #tpu.memory_space<vmem>>, vector<1x20x1xf32>
    %29 = vector.shape_cast %28 : vector<1x20x1xf32> to vector<20x1xf32>
    %30 = vector.broadcast %29 : vector<20x1xf32> to vector<20x512xf32>
    %31 = arith.addf %27, %30 : vector<20x512xf32>
    %32 = math.tanh %31 : vector<20x512xf32>
    %c0_23 = arith.constant 0 : index
    %c0_24 = arith.constant 0 : index
    %33 = vector.load %arg6[%c0_23, %c0_24] : memref<5x20xf32, #tpu.memory_space<vmem>>, vector<5x20xf32>
    %cst_25 = arith.constant dense<0.000000e+00> : vector<5x512xf32>
    %34 = tpu.matmul %33, %32, %cst_25 {dimension_numbers = #tpu.dot_dimension_numbers<[1], [0], [0], [1], [0, 0, 1, 1], [], []>} : vector<5x20xf32>, vector<20x512xf32>, vector<5x512xf32> -> vector<5x512xf32>
    %c0_26 = arith.constant 0 : index
    %c0_27 = arith.constant 0 : index
    %35 = vector.load %arg7[%c0_26, %c0_27] : memref<5x1xf32, #tpu.memory_space<vmem>>, vector<5x1xf32>
    %36 = vector.broadcast %35 : vector<5x1xf32> to vector<5x512xf32>
    %37 = arith.addf %34, %36 : vector<5x512xf32>
    %38 = arith.negf %37 : vector<5x512xf32>
    %39 = math.exp %38 : vector<5x512xf32>
    %cst_28 = arith.constant 1.000000e+00 : f32
    %40 = vector.broadcast %cst_28 : f32 to vector<5x512xf32>
    %41 = arith.addf %40, %39 : vector<5x512xf32>
    %42 = arith.divf %40, %41 : vector<5x512xf32>
    %c0_29 = arith.constant 0 : index
    %c0_30 = arith.constant 0 : index
    %43 = vector.load %arg8[%c0_29, %c0_30] : memref<5x512xf32, #tpu.memory_space<vmem>>, vector<5x512xf32>
    tpu.vector_store %arg8[%c0_29, %c0_30], %42 {strides = array<i32>} : memref<5x512xf32, #tpu.memory_space<vmem>>, vector<5x512xf32>,
    return
  }
  func.func @transform_0(%arg0: i32) -> (i32, i32) {
    %c0_i32 = arith.constant 0 : i32
    %c0_i32_0 = arith.constant 0 : i32
    return %c0_i32, %arg0 : i32, i32
  }
  func.func @transform_1(%arg0: i32) -> (i32, i32) {
    %c0_i32 = arith.constant 0 : i32
    %c0_i32_0 = arith.constant 0 : i32
    %c0_i32_1 = arith.constant 0 : i32
    return %c0_i32, %c0_i32_0 : i32, i32
  }
  func.func @transform_2(%arg0: i32) -> (i32, i32) {
    %c0_i32 = arith.constant 0 : i32
    %c0_i32_0 = arith.constant 0 : i32
    %c0_i32_1 = arith.constant 0 : i32
    return %c0_i32, %c0_i32_0 : i32, i32
  }
  func.func @transform_3(%arg0: i32) -> (i32, i32, i32) {
    %c0_i32 = arith.constant 0 : i32
    %c0_i32_0 = arith.constant 0 : i32
    %c0_i32_1 = arith.constant 0 : i32
    %c0_i32_2 = arith.constant 0 : i32
    return %c0_i32, %c0_i32_0, %c0_i32_1 : i32, i32, i32
  }
  func.func @transform_4(%arg0: i32) -> (i32, i32, i32) {
    %c0_i32 = arith.constant 0 : i32
    %c0_i32_0 = arith.constant 0 : i32
    %c0_i32_1 = arith.constant 0 : i32
    %c0_i32_2 = arith.constant 0 : i32
    return %c0_i32, %c0_i32_0, %c0_i32_1 : i32, i32, i32
  }
  func.func @transform_5(%arg0: i32) -> (i32, i32) {
    %c0_i32 = arith.constant 0 : i32
    %c0_i32_0 = arith.constant 0 : i32
    %c0_i32_1 = arith.constant 0 : i32
    return %c0_i32, %c0_i32_0 : i32, i32
  }
  func.func @transform_6(%arg0: i32) -> (i32, i32) {
    %c0_i32 = arith.constant 0 : i32
    %c0_i32_0 = arith.constant 0 : i32
    %c0_i32_1 = arith.constant 0 : i32
    return %c0_i32, %c0_i32_0 : i32, i32
  }
  func.func @transform_7(%arg0: i32) -> (i32, i32) {
    %c0_i32 = arith.constant 0 : i32
    %c0_i32_0 = arith.constant 0 : i32
    return %c0_i32, %arg0 : i32, i32
  }
}

</mosaic_0001>

<llo_original>
// kernel: seirdnet_forward.1
$region0: #{seirdnet_forward.1}
  #allocation0 [shape = 'u32[]', space=smem, size = 0x4, offset = 0x4, fixed_abs, tag = 'smem constant byte address 0x4 - core index']
  #allocation1 [shape = 'u32[144,128]{1,0:T(1,128)}', space=vmem, size = 0x12000, scoped, tag = 'internal scratch']
  %s0 = inlined_call_operand.vmem [shape: f32[1,365], index: 0, kind: input, shape index: {}]
  %s1 = inlined_call_operand.vmem [shape: f32[20,1], index: 1, kind: input, shape index: {}]
  %s2 = inlined_call_operand.vmem [shape: f32[20,1], index: 2, kind: input, shape index: {}]
  %s3 = inlined_call_operand.vmem [shape: f32[3,20,20], index: 3, kind: input, shape index: {}]
  %s4 = inlined_call_operand.vmem [shape: f32[3,20,1], index: 4, kind: input, shape index: {}]
  %s5 = inlined_call_operand.vmem [shape: f32[5,20], index: 5, kind: input, shape index: {}]
  %s6 = inlined_call_operand.vmem [shape: f32[5,1], index: 6, kind: input, shape index: {}]
  %s7 = inlined_call_operand.hbm [shape: f32[5,365], index: 7, kind: output, shape index: {}]
  %s8 = sld [smem:[#allocation0]]
  $region38: #{seirdnet_forward.1} parent=0
    _
  %s10 = ssub.s32 1, %s8
  %s11 = scalar_select 0, %s10, %s8
  $region1: #{seirdnet_forward.1} parent=0
    #allocation2 [shape = 'u8[16384]{0}', space=vmem, size = 0x4000, scoped, tag = 'output window, operand 0, single buffered']
    #allocation3 [shape = 's32[1]{0}', space=sflag, size = 0x4, scoped, tag = 'scoped memory for seirdnet_forward.1']
    %12 = vsyncpa [#allocation3], 0
    // Predicated region
    $region2: #{seirdnet_forward.1} parent=1 // pred_check
      _
    $region3: #{seirdnet_forward.1} parent=1 // pred_check_branch
      %14 = sbr.rel (0) target = $region5
    $region4: #{seirdnet_forward.1} parent=1 // pred_region
      _
    $region5: #{seirdnet_forward.1} parent=1 // pred_fallthru
      _
    // Predicated region
    $region6: #{seirdnet_forward.1} parent=1 // pred_check
      _
    $region7: #{seirdnet_forward.1} parent=1 // pred_check_branch
      %16 = sbr.rel (0) target = $region9
    $region8: #{seirdnet_forward.1} parent=1 // pred_region
      _
    $region9: #{seirdnet_forward.1} parent=1 // pred_fallthru
      _
    // Predicated region
    $region10: #{seirdnet_forward.1} parent=1 // pred_check
      _
    $region11: #{seirdnet_forward.1} parent=1 // pred_check_branch
      %18 = sbr.rel (0) target = $region13
    $region12: #{seirdnet_forward.1} parent=1 // pred_region
      _
    $region13: #{seirdnet_forward.1} parent=1 // pred_fallthru
      _
    // Predicated region
    $region14: #{seirdnet_forward.1} parent=1 // pred_check
      _
    $region15: #{seirdnet_forward.1} parent=1 // pred_check_branch
      %20 = sbr.rel (0) target = $region17
    $region16: #{seirdnet_forward.1} parent=1 // pred_region
      _
    $region17: #{seirdnet_forward.1} parent=1 // pred_fallthru
      _
    // Predicated region
    $region18: #{seirdnet_forward.1} parent=1 // pred_check
      _
    $region19: #{seirdnet_forward.1} parent=1 // pred_check_branch
      %22 = sbr.rel (0) target = $region21
    $region20: #{seirdnet_forward.1} parent=1 // pred_region
      _
    $region21: #{seirdnet_forward.1} parent=1 // pred_fallthru
      _
    // Predicated region
    $region22: #{seirdnet_forward.1} parent=1 // pred_check
      _
    $region23: #{seirdnet_forward.1} parent=1 // pred_check_branch
      %24 = sbr.rel (0) target = $region25
    $region24: #{seirdnet_forward.1} parent=1 // pred_region
      _
    $region25: #{seirdnet_forward.1} parent=1 // pred_fallthru
      _
    // Predicated region
    $region26: #{seirdnet_forward.1} parent=1 // pred_check
      _
    $region27: #{seirdnet_forward.1} parent=1 // pred_check_branch
      %26 = sbr.rel (0) target = $region29
    $region28: #{seirdnet_forward.1} parent=1 // pred_region
      _
    $region29: #{seirdnet_forward.1} parent=1 // pred_fallthru
      _
    %v27 = vld [vmem:[%s0] sm:$0xf]
    %v28 = vld [vmem:[%s1] sm:$0xff]
    %v29 = vld [vmem:[%s1 + $0x8] sm:$0xff]
    %v30 = vld [vmem:[%s1 + $0x10] sm:$0xf]
    %32 = vset.pattern.permute.xlu0 0
    %33 = vperm.xlu0 %32, %v28
    %v34 = vpop.permute.xlu0 %33
    %37 = vset.pattern.permute.xlu0 0
    %38 = vperm.xlu0 %37, %v29
    %v39 = vpop.permute.xlu0 %38
    %42 = vset.pattern.permute.xlu0 0
    %43 = vperm.xlu0 %42, %v30
    %v44 = vpop.permute.xlu0 %43
    %v47 = vlaneseq
    %v48 = vshrl.u32 %v47, 7
    %v49 = vsub.s32 0, %v48
    %v50 = vrot.slane %v27, %v49
    %v51 = vlaneseq
    %v52 = vshrl.u32 %v51, 7
    %v53 = vsub.s32 1, %v52
    %v54 = vrot.slane %v27, %v53
    %v55 = vlaneseq
    %v56 = vshrl.u32 %v55, 7
    %v57 = vsub.s32 2, %v56
    %v58 = vrot.slane %v27, %v57
    %v59 = vlaneseq
    %v60 = vshrl.u32 %v59, 7
    %v61 = vsub.s32 3, %v60
    %v62 = vrot.slane %v27, %v61
    %v67 = vmul.f32 %v34, %v50
    %v68 = vmul.f32 %v34, %v54
    %v69 = vmul.f32 %v34, %v58
    %v70 = vmul.f32 %v34, %v62
    %v71 = vmul.f32 %v39, %v50
    %v72 = vmul.f32 %v39, %v54
    %v73 = vmul.f32 %v39, %v58
    %v74 = vmul.f32 %v39, %v62
    %v75 = vmul.f32 %v44, %v50
    %v76 = vmul.f32 %v44, %v54
    %v77 = vmul.f32 %v44, %v58
    %v78 = vmul.f32 %v44, %v62
    %v79 = vld [vmem:[%s2] sm:$0xff]
    %v80 = vld [vmem:[%s2 + $0x8] sm:$0xff]
    %v81 = vld [vmem:[%s2 + $0x10] sm:$0xf]
    %83 = vset.pattern.permute.xlu0 0
    %84 = vperm.xlu0 %83, %v79
    %v85 = vpop.permute.xlu0 %84
    %88 = vset.pattern.permute.xlu0 0
    %89 = vperm.xlu0 %88, %v80
    %v90 = vpop.permute.xlu0 %89
    %93 = vset.pattern.permute.xlu0 0
    %94 = vperm.xlu0 %93, %v81
    %v95 = vpop.permute.xlu0 %94
    %v97 = vadd.f32 %v67, %v85
    %v98 = vadd.f32 %v68, %v85
    %v99 = vadd.f32 %v69, %v85
    %v100 = vadd.f32 %v70, %v85
    %v101 = vadd.f32 %v71, %v90
    %v102 = vadd.f32 %v72, %v90
    %v103 = vadd.f32 %v73, %v90
    %v104 = vadd.f32 %v74, %v90
    %v105 = vadd.f32 %v75, %v95
    %v106 = vadd.f32 %v76, %v95
    %v107 = vadd.f32 %v77, %v95
    %v108 = vadd.f32 %v78, %v95
    %v109 = vtanh.pop %v97
    %v110 = vtanh.pop %v98
    %v111 = vtanh.pop %v99
    %v112 = vtanh.pop %v100
    %v113 = vtanh.pop %v101
    %v114 = vtanh.pop %v102
    %v115 = vtanh.pop %v103
    %v116 = vtanh.pop %v104
    %v117 = vtanh.pop %v105
    %v118 = vtanh.pop %v106
    %v119 = vtanh.pop %v107
    %v120 = vtanh.pop %v108
    %v121 = vld [vmem:[%s3] sm:$0xff]
    %v122 = vld [vmem:[%s3 + $0x8] sm:$0xff]
    %v123 = vld [vmem:[%s3 + $0x10] sm:$0xf]
    %v124 = vld [vmem:[%s4] sm:$0xff]
    %v125 = vld [vmem:[%s4 + $0x8] sm:$0xff]
    %v126 = vld [vmem:[%s4 + $0x10] sm:$0xf]
    %128 = vset.pattern.permute.xlu0 0
    %129 = vperm.xlu0 %128, %v124
    %v130 = vpop.permute.xlu0 %129
    %133 = vset.pattern.permute.xlu0 0
    %134 = vperm.xlu0 %133, %v125
    %v135 = vpop.permute.xlu0 %134
    %138 = vset.pattern.permute.xlu0 0
    %139 = vperm.xlu0 %138, %v126
    %v140 = vpop.permute.xlu0 %139
    %vm142 = vcmask 162816
    %v144 = vsel %vm142, %v121, 0
    %v147 = vsel %vm142, %v122, 0
    %v150 = vsel %vm142, %v123, 0
    %vm152 = vcmask 1043456
    %v154 = vsel %vm152, %v117, 0
    %v157 = vsel %vm152, %v118, 0
    %v160 = vsel %vm152, %v119, 0
    %v163 = vsel %vm152, %v120, 0
    %165 = vmatprep.subr.mxu0 0.0
    %166 = vmatpush1.msra.mxu0 0.0
    %167 = vmatprep.subr.mxu0 0.0
    %168 = vmatpush1.msra.mxu0 0.0
    %169 = vmatprep.subr.mxu0 0.0
    %170 = vmatpush1.msra.mxu0 0.0
    %171 = vmatprep.subr.mxu0 0.0
    %172 = vmatpush1.msra.mxu0 0.0
    %173 = vmatprep.subr.mxu0 0.0
    %174 = vmatpush1.msra.mxu0 0.0
    %175 = vmatprep.subr.mxu0 0.0
    %176 = vmatpush1.msra.mxu0 0.0
    %177 = vmatprep.subr.mxu0 0.0
    %178 = vmatpush1.msra.mxu0 0.0
    %179 = vmatprep.subr.mxu0 0.0
    %180 = vmatpush1.msra.mxu0 0.0
    %181 = vmatprep.subr.mxu0 0.0
    %182 = vmatpush1.msra.mxu0 0.0
    %183 = vmatprep.subr.mxu0 0.0
    %184 = vmatpush1.msra.mxu0 0.0
    %185 = vmatprep.subr.mxu0 0.0
    %186 = vmatpush1.msra.mxu0 0.0
    %187 = vmatprep.subr.mxu0 0.0
    %188 = vmatpush1.msra.mxu0 0.0
    %189 = vmatprep.subr.mxu0 0.0
    %190 = vmatpush1.msra.mxu0 0.0
    %191 = vmatprep.subr.mxu0 %v157
    %192 = vmatpush1.msra.mxu0 %v154
    %193 = vmatprep.subr.mxu0 %v114
    %194 = vmatpush1.msra.mxu0 %v113
    %195 = vmatprep.subr.mxu0 %v110
    %196 = vmatpush1.msra.mxu0 %v109
    %197 = vmatprep.subr.mxu0 0.0
    %198 = vmatpush2.msra.mxu0 0.0
    %199 = vmatprep.subr.mxu0 0.0
    %200 = vmatpush2.msra.mxu0 0.0
    %201 = vmatprep.subr.mxu0 0.0
    %202 = vmatpush2.msra.mxu0 0.0
    %203 = vmatprep.subr.mxu0 0.0
    %204 = vmatpush2.msra.mxu0 0.0
    %205 = vmatprep.subr.mxu0 0.0
    %206 = vmatpush2.msra.mxu0 0.0
    %207 = vmatprep.subr.mxu0 0.0
    %208 = vmatpush2.msra.mxu0 0.0
    %209 = vmatprep.subr.mxu0 0.0
    %210 = vmatpush2.msra.mxu0 0.0
    %211 = vmatprep.subr.mxu0 0.0
    %212 = vmatpush2.msra.mxu0 0.0
    %213 = vmatprep.subr.mxu0 0.0
    %214 = vmatpush2.msra.mxu0 0.0
    %215 = vmatprep.subr.mxu0 0.0
    %216 = vmatpush2.msra.mxu0 0.0
    %217 = vmatprep.subr.mxu0 0.0
    %218 = vmatpush2.msra.mxu0 0.0
    %219 = vmatprep.subr.mxu0 0.0
    %220 = vmatpush2.msra.mxu0 0.0
    %221 = vmatprep.subr.mxu0 0.0
    %222 = vmatpush2.msra.mxu0 0.0
    %223 = vmatprep.subr.mxu0 0.0
    %224 = vmatpush2.msra.mxu0 0.0
    %225 = vmatprep.subr.mxu0 0.0
    %226 = vmatpush2.msra.mxu0 0.0
    %227 = vmatprep.subr.mxu0 0.0
    %228 = vmatpush2.msra.mxu0 0.0
    %229 = vmatprep.mubr.f32.mxu0 0.0
    %230 = vmatmul.mubr.f32.gmra.mxu0 %v144
    %v231 = vpop.f32.mrf.mxu0
    %v232 = vadd.f32 %v130, %v231
    %v233 = vpop.f32.mrf.mxu0
    %v234 = vadd.f32 %v130, %v233
    %235 = vmatprep.mubr.f32.mxu0 0.0
    %236 = vmatmul.mubr.f32.gmra.mxu0 %v147
    %v237 = vpop.f32.mrf.mxu0
    %v238 = vadd.f32 %v135, %v237
    %v239 = vpop.f32.mrf.mxu0
    %v240 = vadd.f32 %v135, %v239
    %241 = vmatprep.mubr.f32.mxu0 0.0
    %242 = vmatmul.mubr.f32.gmra.mxu0 %v150
    %v243 = vpop.f32.mrf.mxu0
    %v244 = vadd.f32 %v140, %v243
    %v245 = vpop.f32.mrf.mxu0
    %v246 = vadd.f32 %v140, %v245
    %247 = vdwg.mxu0
    %248 = vmatprep.subr.mxu0 0.0
    %249 = vmatpush1.msra.mxu0 0.0
    %250 = vmatprep.subr.mxu0 0.0
    %251 = vmatpush1.msra.mxu0 0.0
    %252 = vmatprep.subr.mxu0 0.0
    %253 = vmatpush1.msra.mxu0 0.0
    %254 = vmatprep.subr.mxu0 0.0
    %255 = vmatpush1.msra.mxu0 0.0
    %256 = vmatprep.subr.mxu0 0.0
    %257 = vmatpush1.msra.mxu0 0.0
    %258 = vmatprep.subr.mxu0 0.0
    %259 = vmatpush1.msra.mxu0 0.0
    %260 = vmatprep.subr.mxu0 0.0
    %261 = vmatpush1.msra.mxu0 0.0
    %262 = vmatprep.subr.mxu0 0.0
    %263 = vmatpush1.msra.mxu0 0.0
    %264 = vmatprep.subr.mxu0 0.0
    %265 = vmatpush1.msra.mxu0 0.0
    %266 = vmatprep.subr.mxu0 0.0
    %267 = vmatpush1.msra.mxu0 0.0
    %268 = vmatprep.subr.mxu0 0.0
    %269 = vmatpush1.msra.mxu0 0.0
    %270 = vmatprep.subr.mxu0 0.0
    %271 = vmatpush1.msra.mxu0 0.0
    %272 = vmatprep.subr.mxu0 0.0
    %273 = vmatpush1.msra.mxu0 0.0
    %274 = vmatprep.subr.mxu0 %v163
    %275 = vmatpush1.msra.mxu0 %v160
    %276 = vmatprep.subr.mxu0 %v116
    %277 = vmatpush1.msra.mxu0 %v115
    %278 = vmatprep.subr.mxu0 %v112
    %279 = vmatpush1.msra.mxu0 %v111
    %280 = vmatprep.subr.mxu0 0.0
    %281 = vmatpush2.msra.mxu0 0.0
    %282 = vmatprep.subr.mxu0 0.0
    %283 = vmatpush2.msra.mxu0 0.0
    %284 = vmatprep.subr.mxu0 0.0
    %285 = vmatpush2.msra.mxu0 0.0
    %286 = vmatprep.subr.mxu0 0.0
    %287 = vmatpush2.msra.mxu0 0.0
    %288 = vmatprep.subr.mxu0 0.0
    %289 = vmatpush2.msra.mxu0 0.0
    %290 = vmatprep.subr.mxu0 0.0
    %291 = vmatpush2.msra.mxu0 0.0
    %292 = vmatprep.subr.mxu0 0.0
    %293 = vmatpush2.msra.mxu0 0.0
    %294 = vmatprep.subr.mxu0 0.0
    %295 = vmatpush2.msra.mxu0 0.0
    %296 = vmatprep.subr.mxu0 0.0
    %297 = vmatpush2.msra.mxu0 0.0
    %298 = vmatprep.subr.mxu0 0.0
    %299 = vmatpush2.msra.mxu0 0.0
    %300 = vmatprep.subr.mxu0 0.0
    %301 = vmatpush2.msra.mxu0 0.0
    %302 = vmatprep.subr.mxu0 0.0
    %303 = vmatpush2.msra.mxu0 0.0
    %304 = vmatprep.subr.mxu0 0.0
    %305 = vmatpush2.msra.mxu0 0.0
    %306 = vmatprep.subr.mxu0 0.0
    %307 = vmatpush2.msra.mxu0 0.0
    %308 = vmatprep.subr.mxu0 0.0
    %309 = vmatpush2.msra.mxu0 0.0
    %310 = vmatprep.subr.mxu0 0.0
    %311 = vmatpush2.msra.mxu0 0.0
    %312 = vmatprep.mubr.f32.mxu0 0.0
    %313 = vmatmul.mubr.f32.gmra.mxu0 %v144
    %v314 = vpop.f32.mrf.mxu0
    %v315 = vadd.f32 %v130, %v314
    %v316 = vpop.f32.mrf.mxu0
    %v317 = vadd.f32 %v130, %v316
    %318 = vmatprep.mubr.f32.mxu0 0.0
    %319 = vmatmul.mubr.f32.gmra.mxu0 %v147
    %v320 = vpop.f32.mrf.mxu0
    %v321 = vadd.f32 %v135, %v320
    %v322 = vpop.f32.mrf.mxu0
    %v323 = vadd.f32 %v135, %v322
    %324 = vmatprep.mubr.f32.mxu0 0.0
    %325 = vmatmul.mubr.f32.gmra.mxu0 %v150
    %v326 = vpop.f32.mrf.mxu0
    %v327 = vadd.f32 %v140, %v326
    %v328 = vpop.f32.mrf.mxu0
    %v329 = vadd.f32 %v140, %v328
    %330 = vdwg.mxu0
    %v331 = vtanh.pop %v232
    %v332 = vtanh.pop %v234
    %v333 = vtanh.pop %v315
    %v334 = vtanh.pop %v317
    %v335 = vtanh.pop %v238
    %v336 = vtanh.pop %v240
    %v337 = vtanh.pop %v321
    %v338 = vtanh.pop %v323
    %v339 = vtanh.pop %v244
    %v340 = vtanh.pop %v246
    %v341 = vtanh.pop %v327
    %v342 = vtanh.pop %v329
    %s343 = scalar_lea.vmem %s3, 24
    %v344 = vld [vmem:[%s343] sm:$0xff]
    %v345 = vld [vmem:[%s343 + $0x8] sm:$0xff]
    %v346 = vld [vmem:[%s343 + $0x10] sm:$0xf]
    %s347 = scalar_lea.vmem %s4, 24
    %v348 = vld [vmem:[%s347] sm:$0xff]
    %v349 = vld [vmem:[%s347 + $0x8] sm:$0xff]
    %v350 = vld [vmem:[%s347 + $0x10] sm:$0xf]
    %352 = vset.pattern.permute.xlu0 0
    %353 = vperm.xlu0 %352, %v348
    %v354 = vpop.permute.xlu0 %353
    %357 = vset.pattern.permute.xlu0 0
    %358 = vperm.xlu0 %357, %v349
    %v359 = vpop.permute.xlu0 %358
    %362 = vset.pattern.permute.xlu0 0
    %363 = vperm.xlu0 %362, %v350
    %v364 = vpop.permute.xlu0 %363
    %v367 = vsel %vm142, %v344, 0
    %v370 = vsel %vm142, %v345, 0
    %v373 = vsel %vm142, %v346, 0
    %v376 = vsel %vm152, %v339, 0
    %v379 = vsel %vm152, %v340, 0
    %v382 = vsel %vm152, %v341, 0
    %v385 = vsel %vm152, %v342, 0
    %387 = vmatprep.subr.mxu0 0.0
    %388 = vmatpush1.msra.mxu0 0.0
    %389 = vmatprep.subr.mxu0 0.0
    %390 = vmatpush1.msra.mxu0 0.0
    %391 = vmatprep.subr.mxu0 0.0
    %392 = vmatpush1.msra.mxu0 0.0
    %393 = vmatprep.subr.mxu0 0.0
    %394 = vmatpush1.msra.mxu0 0.0
    %395 = vmatprep.subr.mxu0 0.0
    %396 = vmatpush1.msra.mxu0 0.0
    %397 = vmatprep.subr.mxu0 0.0
    %398 = vmatpush1.msra.mxu0 0.0
    %399 = vmatprep.subr.mxu0 0.0
    %400 = vmatpush1.msra.mxu0 0.0
    %401 = vmatprep.subr.mxu0 0.0
    %402 = vmatpush1.msra.mxu0 0.0
    %403 = vmatprep.subr.mxu0 0.0
    %404 = vmatpush1.msra.mxu0 0.0
    %405 = vmatprep.subr.mxu0 0.0
    %406 = vmatpush1.msra.mxu0 0.0
    %407 = vmatprep.subr.mxu0 0.0
    %408 = vmatpush1.msra.mxu0 0.0
    %409 = vmatprep.subr.mxu0 0.0
    %410 = vmatpush1.msra.mxu0 0.0
    %411 = vmatprep.subr.mxu0 0.0
    %412 = vmatpush1.msra.mxu0 0.0
    %413 = vmatprep.subr.mxu0 %v379
    %414 = vmatpush1.msra.mxu0 %v376
    %415 = vmatprep.subr.mxu0 %v336
    %416 = vmatpush1.msra.mxu0 %v335
    %417 = vmatprep.subr.mxu0 %v332
    %418 = vmatpush1.msra.mxu0 %v331
    %419 = vmatprep.subr.mxu0 0.0
    %420 = vmatpush2.msra.mxu0 0.0
    %421 = vmatprep.subr.mxu0 0.0
    %422 = vmatpush2.msra.mxu0 0.0
    %423 = vmatprep.subr.mxu0 0.0
    %424 = vmatpush2.msra.mxu0 0.0
    %425 = vmatprep.subr.mxu0 0.0
    %426 = vmatpush2.msra.mxu0 0.0
    %427 = vmatprep.subr.mxu0 0.0
    %428 = vmatpush2.msra.mxu0 0.0
    %429 = vmatprep.subr.mxu0 0.0
    %430 = vmatpush2.msra.mxu0 0.0
    %431 = vmatprep.subr.mxu0 0.0
    %432 = vmatpush2.msra.mxu0 0.0
    %433 = vmatprep.subr.mxu0 0.0
    %434 = vmatpush2.msra.mxu0 0.0
    %435 = vmatprep.subr.mxu0 0.0
    %436 = vmatpush2.msra.mxu0 0.0
    %437 = vmatprep.subr.mxu0 0.0
    %438 = vmatpush2.msra.mxu0 0.0
    %439 = vmatprep.subr.mxu0 0.0
    %440 = vmatpush2.msra.mxu0 0.0
    %441 = vmatprep.subr.mxu0 0.0
    %442 = vmatpush2.msra.mxu0 0.0
    %443 = vmatprep.subr.mxu0 0.0
    %444 = vmatpush2.msra.mxu0 0.0
    %445 = vmatprep.subr.mxu0 0.0
    %446 = vmatpush2.msra.mxu0 0.0
    %447 = vmatprep.subr.mxu0 0.0
    %448 = vmatpush2.msra.mxu0 0.0
    %449 = vmatprep.subr.mxu0 0.0
    %450 = vmatpush2.msra.mxu0 0.0
    %451 = vmatprep.mubr.f32.mxu0 0.0
    %452 = vmatmul.mubr.f32.gmra.mxu0 %v367
    %v453 = vpop.f32.mrf.mxu0
    %v454 = vadd.f32 %v354, %v453
    %v455 = vpop.f32.mrf.mxu0
    %v456 = vadd.f32 %v354, %v455
    %457 = vmatprep.mubr.f32.mxu0 0.0
    %458 = vmatmul.mubr.f32.gmra.mxu0 %v370
    %v459 = vpop.f32.mrf.mxu0
    %v460 = vadd.f32 %v359, %v459
    %v461 = vpop.f32.mrf.mxu0
    %v462 = vadd.f32 %v359, %v461
    %463 = vmatprep.mubr.f32.mxu0 0.0
    %464 = vmatmul.mubr.f32.gmra.mxu0 %v373
    %v465 = vpop.f32.mrf.mxu0
    %v466 = vadd.f32 %v364, %v465
    %v467 = vpop.f32.mrf.mxu0
    %v468 = vadd.f32 %v364, %v467
    %469 = vdwg.mxu0
    %470 = vmatprep.subr.mxu0 0.0
    %471 = vmatpush1.msra.mxu0 0.0
    %472 = vmatprep.subr.mxu0 0.0
    %473 = vmatpush1.msra.mxu0 0.0
    %474 = vmatprep.subr.mxu0 0.0
    %475 = vmatpush1.msra.mxu0 0.0
    %476 = vmatprep.subr.mxu0 0.0
    %477 = vmatpush1.msra.mxu0 0.0
    %478 = vmatprep.subr.mxu0 0.0
    %479 = vmatpush1.msra.mxu0 0.0
    %480 = vmatprep.subr.mxu0 0.0
    %481 = vmatpush1.msra.mxu0 0.0
    %482 = vmatprep.subr.mxu0 0.0
    %483 = vmatpush1.msra.mxu0 0.0
    %484 = vmatprep.subr.mxu0 0.0
    %485 = vmatpush1.msra.mxu0 0.0
    %486 = vmatprep.subr.mxu0 0.0
    %487 = vmatpush1.msra.mxu0 0.0
    %488 = vmatprep.subr.mxu0 0.0
    %489 = vmatpush1.msra.mxu0 0.0
    %490 = vmatprep.subr.mxu0 0.0
    %491 = vmatpush1.msra.mxu0 0.0
    %492 = vmatprep.subr.mxu0 0.0
    %493 = vmatpush1.msra.mxu0 0.0
    %494 = vmatprep.subr.mxu0 0.0
    %495 = vmatpush1.msra.mxu0 0.0
    %496 = vmatprep.subr.mxu0 %v385
    %497 = vmatpush1.msra.mxu0 %v382
    %498 = vmatprep.subr.mxu0 %v338
    %499 = vmatpush1.msra.mxu0 %v337
    %500 = vmatprep.subr.mxu0 %v334
    %501 = vmatpush1.msra.mxu0 %v333
    %502 = vmatprep.subr.mxu0 0.0
    %503 = vmatpush2.msra.mxu0 0.0
    %504 = vmatprep.subr.mxu0 0.0
    %505 = vmatpush2.msra.mxu0 0.0
    %506 = vmatprep.subr.mxu0 0.0
    %507 = vmatpush2.msra.mxu0 0.0
    %508 = vmatprep.subr.mxu0 0.0
    %509 = vmatpush2.msra.mxu0 0.0
    %510 = vmatprep.subr.mxu0 0.0
    %511 = vmatpush2.msra.mxu0 0.0
    %512 = vmatprep.subr.mxu0 0.0
    %513 = vmatpush2.msra.mxu0 0.0
    %514 = vmatprep.subr.mxu0 0.0
    %515 = vmatpush2.msra.mxu0 0.0
    %516 = vmatprep.subr.mxu0 0.0
    %517 = vmatpush2.msra.mxu0 0.0
    %518 = vmatprep.subr.mxu0 0.0
    %519 = vmatpush2.msra.mxu0 0.0
    %520 = vmatprep.subr.mxu0 0.0
    %521 = vmatpush2.msra.mxu0 0.0
    %522 = vmatprep.subr.mxu0 0.0
    %523 = vmatpush2.msra.mxu0 0.0
    %524 = vmatprep.subr.mxu0 0.0
    %525 = vmatpush2.msra.mxu0 0.0
    %526 = vmatprep.subr.mxu0 0.0
    %527 = vmatpush2.msra.mxu0 0.0
    %528 = vmatprep.subr.mxu0 0.0
    %529 = vmatpush2.msra.mxu0 0.0
    %530 = vmatprep.subr.mxu0 0.0
    %531 = vmatpush2.msra.mxu0 0.0
    %532 = vmatprep.subr.mxu0 0.0
    %533 = vmatpush2.msra.mxu0 0.0
    %534 = vmatprep.mubr.f32.mxu0 0.0
    %535 = vmatmul.mubr.f32.gmra.mxu0 %v367
    %v536 = vpop.f32.mrf.mxu0
    %v537 = vadd.f32 %v354, %v536
    %v538 = vpop.f32.mrf.mxu0
    %v539 = vadd.f32 %v354, %v538
    %540 = vmatprep.mubr.f32.mxu0 0.0
    %541 = vmatmul.mubr.f32.gmra.mxu0 %v370
    %v542 = vpop.f32.mrf.mxu0
    %v543 = vadd.f32 %v359, %v542
    %v544 = vpop.f32.mrf.mxu0
    %v545 = vadd.f32 %v359, %v544
    %546 = vmatprep.mubr.f32.mxu0 0.0
    %547 = vmatmul.mubr.f32.gmra.mxu0 %v373
    %v548 = vpop.f32.mrf.mxu0
    %v549 = vadd.f32 %v364, %v548
    %v550 = vpop.f32.mrf.mxu0
    %v551 = vadd.f32 %v364, %v550
    %552 = vdwg.mxu0
    %v553 = vtanh.pop %v454
    %v554 = vtanh.pop %v456
    %v555 = vtanh.pop %v537
    %v556 = vtanh.pop %v539
    %v557 = vtanh.pop %v460
    %v558 = vtanh.pop %v462
    %v559 = vtanh.pop %v543
    %v560 = vtanh.pop %v545
    %v561 = vtanh.pop %v466
    %v562 = vtanh.pop %v468
    %v563 = vtanh.pop %v549
    %v564 = vtanh.pop %v551
    %s565 = scalar_lea.vmem %s3, 48
    %v566 = vld [vmem:[%s565] sm:$0xff]
    %v567 = vld [vmem:[%s565 + $0x8] sm:$0xff]
    %v568 = vld [vmem:[%s565 + $0x10] sm:$0xf]
    %s569 = scalar_lea.vmem %s4, 48
    %v570 = vld [vmem:[%s569] sm:$0xff]
    %v571 = vld [vmem:[%s569 + $0x8] sm:$0xff]
    %v572 = vld [vmem:[%s569 + $0x10] sm:$0xf]
    %574 = vset.pattern.permute.xlu0 0
    %575 = vperm.xlu0 %574, %v570
    %v576 = vpop.permute.xlu0 %575
    %579 = vset.pattern.permute.xlu0 0
    %580 = vperm.xlu0 %579, %v571
    %v581 = vpop.permute.xlu0 %580
    %584 = vset.pattern.permute.xlu0 0
    %585 = vperm.xlu0 %584, %v572
    %v586 = vpop.permute.xlu0 %585
    %v589 = vsel %vm142, %v566, 0
    %v592 = vsel %vm142, %v567, 0
    %v595 = vsel %vm142, %v568, 0
    %v598 = vsel %vm152, %v561, 0
    %v601 = vsel %vm152, %v562, 0
    %v604 = vsel %vm152, %v563, 0
    %v607 = vsel %vm152, %v564, 0
    %609 = vmatprep.subr.mxu0 0.0
    %610 = vmatpush1.msra.mxu0 0.0
    %611 = vmatprep.subr.mxu0 0.0
    %612 = vmatpush1.msra.mxu0 0.0
    %613 = vmatprep.subr.mxu0 0.0
    %614 = vmatpush1.msra.mxu0 0.0
    %615 = vmatprep.subr.mxu0 0.0
    %616 = vmatpush1.msra.mxu0 0.0
    %617 = vmatprep.subr.mxu0 0.0
    %618 = vmatpush1.msra.mxu0 0.0
    %619 = vmatprep.subr.mxu0 0.0
    %620 = vmatpush1.msra.mxu0 0.0
    %621 = vmatprep.subr.mxu0 0.0
    %622 = vmatpush1.msra.mxu0 0.0
    %623 = vmatprep.subr.mxu0 0.0
    %624 = vmatpush1.msra.mxu0 0.0
    %625 = vmatprep.subr.mxu0 0.0
    %626 = vmatpush1.msra.mxu0 0.0
    %627 = vmatprep.subr.mxu0 0.0
    %628 = vmatpush1.msra.mxu0 0.0
    %629 = vmatprep.subr.mxu0 0.0
    %630 = vmatpush1.msra.mxu0 0.0
    %631 = vmatprep.subr.mxu0 0.0
    %632 = vmatpush1.msra.mxu0 0.0
    %633 = vmatprep.subr.mxu0 0.0
    %634 = vmatpush1.msra.mxu0 0.0
    %635 = vmatprep.subr.mxu0 %v601
    %636 = vmatpush1.msra.mxu0 %v598
    %637 = vmatprep.subr.mxu0 %v558
    %638 = vmatpush1.msra.mxu0 %v557
    %639 = vmatprep.subr.mxu0 %v554
    %640 = vmatpush1.msra.mxu0 %v553
    %641 = vmatprep.subr.mxu0 0.0
    %642 = vmatpush2.msra.mxu0 0.0
    %643 = vmatprep.subr.mxu0 0.0
    %644 = vmatpush2.msra.mxu0 0.0
    %645 = vmatprep.subr.mxu0 0.0
    %646 = vmatpush2.msra.mxu0 0.0
    %647 = vmatprep.subr.mxu0 0.0
    %648 = vmatpush2.msra.mxu0 0.0
    %649 = vmatprep.subr.mxu0 0.0
    %650 = vmatpush2.msra.mxu0 0.0
    %651 = vmatprep.subr.mxu0 0.0
    %652 = vmatpush2.msra.mxu0 0.0
    %653 = vmatprep.subr.mxu0 0.0
    %654 = vmatpush2.msra.mxu0 0.0
    %655 = vmatprep.subr.mxu0 0.0
    %656 = vmatpush2.msra.mxu0 0.0
    %657 = vmatprep.subr.mxu0 0.0
    %658 = vmatpush2.msra.mxu0 0.0
    %659 = vmatprep.subr.mxu0 0.0
    %660 = vmatpush2.msra.mxu0 0.0
    %661 = vmatprep.subr.mxu0 0.0
    %662 = vmatpush2.msra.mxu0 0.0
    %663 = vmatprep.subr.mxu0 0.0
    %664 = vmatpush2.msra.mxu0 0.0
    %665 = vmatprep.subr.mxu0 0.0
    %666 = vmatpush2.msra.mxu0 0.0
    %667 = vmatprep.subr.mxu0 0.0
    %668 = vmatpush2.msra.mxu0 0.0
    %669 = vmatprep.subr.mxu0 0.0
    %670 = vmatpush2.msra.mxu0 0.0
    %671 = vmatprep.subr.mxu0 0.0
    %672 = vmatpush2.msra.mxu0 0.0
    %673 = vmatprep.mubr.f32.mxu0 0.0
    %674 = vmatmul.mubr.f32.gmra.mxu0 %v589
    %v675 = vpop.f32.mrf.mxu0
    %v676 = vadd.f32 %v576, %v675
    %v677 = vpop.f32.mrf.mxu0
    %v678 = vadd.f32 %v576, %v677
    %679 = vmatprep.mubr.f32.mxu0 0.0
    %680 = vmatmul.mubr.f32.gmra.mxu0 %v592
    %v681 = vpop.f32.mrf.mxu0
    %v682 = vadd.f32 %v581, %v681
    %v683 = vpop.f32.mrf.mxu0
    %v684 = vadd.f32 %v581, %v683
    %685 = vmatprep.mubr.f32.mxu0 0.0
    %686 = vmatmul.mubr.f32.gmra.mxu0 %v595
    %v687 = vpop.f32.mrf.mxu0
    %v688 = vadd.f32 %v586, %v687
    %v689 = vpop.f32.mrf.mxu0
    %v690 = vadd.f32 %v586, %v689
    %691 = vdwg.mxu0
    %692 = vmatprep.subr.mxu0 0.0
    %693 = vmatpush1.msra.mxu0 0.0
    %694 = vmatprep.subr.mxu0 0.0
    %695 = vmatpush1.msra.mxu0 0.0
    %696 = vmatprep.subr.mxu0 0.0
    %697 = vmatpush1.msra.mxu0 0.0
    %698 = vmatprep.subr.mxu0 0.0
    %699 = vmatpush1.msra.mxu0 0.0
    %700 = vmatprep.subr.mxu0 0.0
    %701 = vmatpush1.msra.mxu0 0.0
    %702 = vmatprep.subr.mxu0 0.0
    %703 = vmatpush1.msra.mxu0 0.0
    %704 = vmatprep.subr.mxu0 0.0
    %705 = vmatpush1.msra.mxu0 0.0
    %706 = vmatprep.subr.mxu0 0.0
    %707 = vmatpush1.msra.mxu0 0.0
    %708 = vmatprep.subr.mxu0 0.0
    %709 = vmatpush1.msra.mxu0 0.0
    %710 = vmatprep.subr.mxu0 0.0
    %711 = vmatpush1.msra.mxu0 0.0
    %712 = vmatprep.subr.mxu0 0.0
    %713 = vmatpush1.msra.mxu0 0.0
    %714 = vmatprep.subr.mxu0 0.0
    %715 = vmatpush1.msra.mxu0 0.0
    %716 = vmatprep.subr.mxu0 0.0
    %717 = vmatpush1.msra.mxu0 0.0
    %718 = vmatprep.subr.mxu0 %v607
    %719 = vmatpush1.msra.mxu0 %v604
    %720 = vmatprep.subr.mxu0 %v560
    %721 = vmatpush1.msra.mxu0 %v559
    %722 = vmatprep.subr.mxu0 %v556
    %723 = vmatpush1.msra.mxu0 %v555
    %724 = vmatprep.subr.mxu0 0.0
    %725 = vmatpush2.msra.mxu0 0.0
    %726 = vmatprep.subr.mxu0 0.0
    %727 = vmatpush2.msra.mxu0 0.0
    %728 = vmatprep.subr.mxu0 0.0
    %729 = vmatpush2.msra.mxu0 0.0
    %730 = vmatprep.subr.mxu0 0.0
    %731 = vmatpush2.msra.mxu0 0.0
    %732 = vmatprep.subr.mxu0 0.0
    %733 = vmatpush2.msra.mxu0 0.0
    %734 = vmatprep.subr.mxu0 0.0
    %735 = vmatpush2.msra.mxu0 0.0
    %736 = vmatprep.subr.mxu0 0.0
    %737 = vmatpush2.msra.mxu0 0.0
    %738 = vmatprep.subr.mxu0 0.0
    %739 = vmatpush2.msra.mxu0 0.0
    %740 = vmatprep.subr.mxu0 0.0
    %741 = vmatpush2.msra.mxu0 0.0
    %742 = vmatprep.subr.mxu0 0.0
    %743 = vmatpush2.msra.mxu0 0.0
    %744 = vmatprep.subr.mxu0 0.0
    %745 = vmatpush2.msra.mxu0 0.0
    %746 = vmatprep.subr.mxu0 0.0
    %747 = vmatpush2.msra.mxu0 0.0
    %748 = vmatprep.subr.mxu0 0.0
    %749 = vmatpush2.msra.mxu0 0.0
    %750 = vmatprep.subr.mxu0 0.0
    %751 = vmatpush2.msra.mxu0 0.0
    %752 = vmatprep.subr.mxu0 0.0
    %753 = vmatpush2.msra.mxu0 0.0
    %754 = vmatprep.subr.mxu0 0.0
    %755 = vmatpush2.msra.mxu0 0.0
    %756 = vmatprep.mubr.f32.mxu0 0.0
    %757 = vmatmul.mubr.f32.gmra.mxu0 %v589
    %v758 = vpop.f32.mrf.mxu0
    %v759 = vadd.f32 %v576, %v758
    %v760 = vpop.f32.mrf.mxu0
    %v761 = vadd.f32 %v576, %v760
    %762 = vmatprep.mubr.f32.mxu0 0.0
    %763 = vmatmul.mubr.f32.gmra.mxu0 %v592
    %v764 = vpop.f32.mrf.mxu0
    %v765 = vadd.f32 %v581, %v764
    %v766 = vpop.f32.mrf.mxu0
    %v767 = vadd.f32 %v581, %v766
    %768 = vmatprep.mubr.f32.mxu0 0.0
    %769 = vmatmul.mubr.f32.gmra.mxu0 %v595
    %v770 = vpop.f32.mrf.mxu0
    %v771 = vadd.f32 %v586, %v770
    %v772 = vpop.f32.mrf.mxu0
    %v773 = vadd.f32 %v586, %v772
    %774 = vdwg.mxu0
    %v775 = vtanh.pop %v676
    %v776 = vtanh.pop %v678
    %v777 = vtanh.pop %v759
    %v778 = vtanh.pop %v761
    %v779 = vtanh.pop %v682
    %v780 = vtanh.pop %v684
    %v781 = vtanh.pop %v765
    %v782 = vtanh.pop %v767
    %v783 = vtanh.pop %v688
    %v784 = vtanh.pop %v690
    %v785 = vtanh.pop %v771
    %v786 = vtanh.pop %v773
    %v787 = vld [vmem:[%s5] sm:$0x1f]
    %v788 = vld [vmem:[%s6] sm:$0x1f]
    %790 = vset.pattern.permute.xlu0 0
    %791 = vperm.xlu0 %790, %v788
    %v792 = vpop.permute.xlu0 %791
    %v795 = vsel %vm142, %v787, 0
    %v798 = vsel %vm152, %v783, 0
    %v801 = vsel %vm152, %v784, 0
    %v804 = vsel %vm152, %v785, 0
    %v807 = vsel %vm152, %v786, 0
    %809 = vmatprep.subr.mxu0 0.0
    %810 = vmatpush1.msra.mxu0 0.0
    %811 = vmatprep.subr.mxu0 0.0
    %812 = vmatpush1.msra.mxu0 0.0
    %813 = vmatprep.subr.mxu0 0.0
    %814 = vmatpush1.msra.mxu0 0.0
    %815 = vmatprep.subr.mxu0 0.0
    %816 = vmatpush1.msra.mxu0 0.0
    %817 = vmatprep.subr.mxu0 0.0
    %818 = vmatpush1.msra.mxu0 0.0
    %819 = vmatprep.subr.mxu0 0.0
    %820 = vmatpush1.msra.mxu0 0.0
    %821 = vmatprep.subr.mxu0 0.0
    %822 = vmatpush1.msra.mxu0 0.0
    %823 = vmatprep.subr.mxu0 0.0
    %824 = vmatpush1.msra.mxu0 0.0
    %825 = vmatprep.subr.mxu0 0.0
    %826 = vmatpush1.msra.mxu0 0.0
    %827 = vmatprep.subr.mxu0 0.0
    %828 = vmatpush1.msra.mxu0 0.0
    %829 = vmatprep.subr.mxu0 0.0
    %830 = vmatpush1.msra.mxu0 0.0
    %831 = vmatprep.subr.mxu0 0.0
    %832 = vmatpush1.msra.mxu0 0.0
    %833 = vmatprep.subr.mxu0 0.0
    %834 = vmatpush1.msra.mxu0 0.0
    %835 = vmatprep.subr.mxu0 %v801
    %836 = vmatpush1.msra.mxu0 %v798
    %837 = vmatprep.subr.mxu0 %v780
    %838 = vmatpush1.msra.mxu0 %v779
    %839 = vmatprep.subr.mxu0 %v776
    %840 = vmatpush1.msra.mxu0 %v775
    %841 = vmatprep.subr.mxu0 0.0
    %842 = vmatpush2.msra.mxu0 0.0
    %843 = vmatprep.subr.mxu0 0.0
    %844 = vmatpush2.msra.mxu0 0.0
    %845 = vmatprep.subr.mxu0 0.0
    %846 = vmatpush2.msra.mxu0 0.0
    %847 = vmatprep.subr.mxu0 0.0
    %848 = vmatpush2.msra.mxu0 0.0
    %849 = vmatprep.subr.mxu0 0.0
    %850 = vmatpush2.msra.mxu0 0.0
    %851 = vmatprep.subr.mxu0 0.0
    %852 = vmatpush2.msra.mxu0 0.0
    %853 = vmatprep.subr.mxu0 0.0
    %854 = vmatpush2.msra.mxu0 0.0
    %855 = vmatprep.subr.mxu0 0.0
    %856 = vmatpush2.msra.mxu0 0.0
    %857 = vmatprep.subr.mxu0 0.0
    %858 = vmatpush2.msra.mxu0 0.0
    %859 = vmatprep.subr.mxu0 0.0
    %860 = vmatpush2.msra.mxu0 0.0
    %861 = vmatprep.subr.mxu0 0.0
    %862 = vmatpush2.msra.mxu0 0.0
    %863 = vmatprep.subr.mxu0 0.0
    %864 = vmatpush2.msra.mxu0 0.0
    %865 = vmatprep.subr.mxu0 0.0
    %866 = vmatpush2.msra.mxu0 0.0
    %867 = vmatprep.subr.mxu0 0.0
    %868 = vmatpush2.msra.mxu0 0.0
    %869 = vmatprep.subr.mxu0 0.0
    %870 = vmatpush2.msra.mxu0 0.0
    %871 = vmatprep.subr.mxu0 0.0
    %872 = vmatpush2.msra.mxu0 0.0
    %873 = vmatprep.mubr.f32.mxu0 0.0
    %874 = vmatmul.mubr.f32.gmra.mxu0 %v795
    %v875 = vpop.f32.mrf.mxu0
    %v876 = vadd.f32 %v792, %v875
    %v877 = vpop.f32.mrf.mxu0
    %v878 = vadd.f32 %v792, %v877
    %879 = vdwg.mxu0
    %880 = vmatprep.subr.mxu0 0.0
    %881 = vmatpush1.msra.mxu0 0.0
    %882 = vmatprep.subr.mxu0 0.0
    %883 = vmatpush1.msra.mxu0 0.0
    %884 = vmatprep.subr.mxu0 0.0
    %885 = vmatpush1.msra.mxu0 0.0
    %886 = vmatprep.subr.mxu0 0.0
    %887 = vmatpush1.msra.mxu0 0.0
    %888 = vmatprep.subr.mxu0 0.0
    %889 = vmatpush1.msra.mxu0 0.0
    %890 = vmatprep.subr.mxu0 0.0
    %891 = vmatpush1.msra.mxu0 0.0
    %892 = vmatprep.subr.mxu0 0.0
    %893 = vmatpush1.msra.mxu0 0.0
    %894 = vmatprep.subr.mxu0 0.0
    %895 = vmatpush1.msra.mxu0 0.0
    %896 = vmatprep.subr.mxu0 0.0
    %897 = vmatpush1.msra.mxu0 0.0
    %898 = vmatprep.subr.mxu0 0.0
    %899 = vmatpush1.msra.mxu0 0.0
    %900 = vmatprep.subr.mxu0 0.0
    %901 = vmatpush1.msra.mxu0 0.0
    %902 = vmatprep.subr.mxu0 0.0
    %903 = vmatpush1.msra.mxu0 0.0
    %904 = vmatprep.subr.mxu0 0.0
    %905 = vmatpush1.msra.mxu0 0.0
    %906 = vmatprep.subr.mxu0 %v807
    %907 = vmatpush1.msra.mxu0 %v804
    %908 = vmatprep.subr.mxu0 %v782
    %909 = vmatpush1.msra.mxu0 %v781
    %910 = vmatprep.subr.mxu0 %v778
    %911 = vmatpush1.msra.mxu0 %v777
    %912 = vmatprep.subr.mxu0 0.0
    %913 = vmatpush2.msra.mxu0 0.0
    %914 = vmatprep.subr.mxu0 0.0
    %915 = vmatpush2.msra.mxu0 0.0
    %916 = vmatprep.subr.mxu0 0.0
    %917 = vmatpush2.msra.mxu0 0.0
    %918 = vmatprep.subr.mxu0 0.0
    %919 = vmatpush2.msra.mxu0 0.0
    %920 = vmatprep.subr.mxu0 0.0
    %921 = vmatpush2.msra.mxu0 0.0
    %922 = vmatprep.subr.mxu0 0.0
    %923 = vmatpush2.msra.mxu0 0.0
    %924 = vmatprep.subr.mxu0 0.0
    %925 = vmatpush2.msra.mxu0 0.0
    %926 = vmatprep.subr.mxu0 0.0
    %927 = vmatpush2.msra.mxu0 0.0
    %928 = vmatprep.subr.mxu0 0.0
    %929 = vmatpush2.msra.mxu0 0.0
    %930 = vmatprep.subr.mxu0 0.0
    %931 = vmatpush2.msra.mxu0 0.0
    %932 = vmatprep.subr.mxu0 0.0
    %933 = vmatpush2.msra.mxu0 0.0
    %934 = vmatprep.subr.mxu0 0.0
    %935 = vmatpush2.msra.mxu0 0.0
    %936 = vmatprep.subr.mxu0 0.0
    %937 = vmatpush2.msra.mxu0 0.0
    %938 = vmatprep.subr.mxu0 0.0
    %939 = vmatpush2.msra.mxu0 0.0
    %940 = vmatprep.subr.mxu0 0.0
    %941 = vmatpush2.msra.mxu0 0.0
    %942 = vmatprep.subr.mxu0 0.0
    %943 = vmatpush2.msra.mxu0 0.0
    %944 = vmatprep.mubr.f32.mxu0 0.0
    %945 = vmatmul.mubr.f32.gmra.mxu0 %v795
    %v946 = vpop.f32.mrf.mxu0
    %v947 = vadd.f32 %v792, %v946
    %v948 = vpop.f32.mrf.mxu0
    %v949 = vadd.f32 %v792, %v948
    %950 = vdwg.mxu0
    %v951 = vxor.u32 %v876, 2147483648
    %v952 = vxor.u32 %v878, 2147483648
    %v953 = vxor.u32 %v947, 2147483648
    %v954 = vxor.u32 %v949, 2147483648
    %v955 = vmul.f32 %v951, 1.442695
    %v956 = vpow.pop %v955
    %v957 = vmul.f32 %v952, 1.442695
    %v958 = vpow.pop %v957
    %v959 = vmul.f32 %v953, 1.442695
    %v960 = vpow.pop %v959
    %v961 = vmul.f32 %v954, 1.442695
    %v962 = vpow.pop %v961
    %v963 = vadd.f32 %v956, 1.0
    %v964 = vadd.f32 %v958, 1.0
    %v965 = vadd.f32 %v960, 1.0
    %v966 = vadd.f32 %v962, 1.0
    %v967 = vrcp.pop %v963
    %v968 = vmul.f32 1.0, %v967
    %v969 = vrcp.pop %v964
    %v970 = vmul.f32 1.0, %v969
    %v971 = vrcp.pop %v965
    %v972 = vmul.f32 1.0, %v971
    %v973 = vrcp.pop %v966
    %v974 = vmul.f32 1.0, %v973
    %975 = vst [vmem:[#allocation2] sm:$0x1f] %v968
    %976 = vst [vmem:[#allocation2 + $0x8] sm:$0x1f] %v970
    %977 = vst [vmem:[#allocation2 + $0x10] sm:$0x1f] %v972
    %978 = vst [vmem:[#allocation2 + $0x18] sm:$0x1f] %v974
    // Predicated region
    $region30: #{seirdnet_forward.1} parent=1 // pred_check
      _
    $region31: #{seirdnet_forward.1} parent=1 // pred_check_branch
      %980 = sbr.rel (0) target = $region33
    $region32: #{seirdnet_forward.1} parent=1 // pred_region
      %s982 = ssub.s32 512, 384
      %983 = vsyncadd [#allocation3], %s982
      %s985 = sshll.u32 [#allocation2], 4
      %s986 = int_to_ptr.vmem [resolvable:$true] %s985
      %988 = dma.vmem_to_hbm [thread:$0]  %s986, 384, %s7, [#allocation3]
    $region33: #{seirdnet_forward.1} parent=1 // pred_fallthru
      _
    // Predicated region
    $region34: #{seirdnet_forward.1} parent=1 // pred_check
      _
    $region35: #{seirdnet_forward.1} parent=1 // pred_check_branch
      %990 = sbr.rel (0) target = $region37
    $region36: #{seirdnet_forward.1} parent=1 // pred_region
      %991 = dma.done [#allocation3], 512
    $region37: #{seirdnet_forward.1} parent=1 // pred_fallthru
      _
    %992 = vsyncpa [#allocation3], 1

</llo_original>
